<compile_context>
chip_gen: v7x
topology: tpu7x:2x2x1
jax: 0.10.0
libtpu: 0.0.40
codegen_flags: <defaults>
</compile_context>

<pallas_src>
import math

import jax
import jax.numpy as jnp
from jax import lax
from jax.experimental import pallas as pl
from jax.experimental.pallas import tpu as pltpu


def _round_up(x, m):
    return (x + m - 1) // m * m


def _kernel_single_k(x_ref, v_ref, s_ref, b_ref, o_ref):
    # One MXU matmul per (TM, TN) tile; f32 accumulation; output-side scale.
    acc = jnp.dot(x_ref[...], v_ref[...], preferred_element_type=jnp.float32)
    o_ref[...] = (acc * s_ref[...] + b_ref[...]).astype(o_ref.dtype)


def _kernel_multi_k(x_ref, v_ref, s_ref, b_ref, o_ref, acc_ref):
    # K-tiled variant: f32 accumulator scratch, init at k==0, store at k==last.
    @pl.when(pl.program_id(2) == 0)
    def _():
        acc_ref[...] = jnp.zeros_like(acc_ref)

    acc_ref[...] += jnp.dot(x_ref[...], v_ref[...],
                            preferred_element_type=jnp.float32)

    @pl.when(pl.program_id(2) == pl.num_programs(2) - 1)
    def _():
        o_ref[...] = (acc_ref[...] * s_ref[...] + b_ref[...]).astype(o_ref.dtype)


def linear_weightnorm(x, v, g, b=None, *, block_m=256, block_n=256,
                      block_k=2048, matmul_dtype=jnp.bfloat16,
                      out_dtype=jnp.float32):
    """Weight-normalized linear forward.

    x: (..., in_features); v: (out_features, in_features);
    g: (out_features,); b: (out_features,) or None.
    Returns (..., out_features) in `out_dtype`.
    """
    *lead, K = x.shape
    N_out, K2 = v.shape
    assert K == K2, (K, K2)
    M = math.prod(lead) if lead else 1

    # --- per-out-feature scale (f32, tiny) -- the whole weight norm -------
    v_f32 = v.astype(jnp.float32)
    # No epsilon: matches torch.nn.utils.weight_norm (all-zero v row -> NaN).
    scale = g.astype(jnp.float32) * lax.rsqrt(jnp.sum(v_f32 * v_f32, axis=1))
    b_f32 = (jnp.zeros((N_out,), jnp.float32) if b is None
             else b.astype(jnp.float32))

    # --- tile sizes -------------------------------------------------------
    mm_sz = jnp.dtype(matmul_dtype).itemsize
    sub = max(8, 32 // max(mm_sz, 1))          # 8 f32 / 16 bf16 / 32 int8-fp8
    TM = min(_round_up(block_m, sub), _round_up(M, sub))
    TN = min(_round_up(block_n, 128), _round_up(N_out, 128))
    if K > block_k:                            # tile K (large in_features)
        TK = _round_up(block_k, 128)
        K_pad = _round_up(K, TK)
    else:                                      # single full-K tile
        TK = K
        K_pad = K
    M_pad = _round_up(M, TM)
    N_pad = _round_up(N_out, TN)
    m_tiles, n_tiles, k_tiles = M_pad // TM, N_pad // TN, K_pad // TK

    # --- operands in matmul dtype, padded (lane-dense N) --------------------
    x2 = x.reshape(M, K).astype(matmul_dtype)
    if M_pad != M or K_pad != K:
        x2 = jnp.pad(x2, ((0, M_pad - M), (0, K_pad - K)))
    v_t = v.T.astype(matmul_dtype)             # (K, N): no in-kernel transpose
    if K_pad != K or N_pad != N_out:
        v_t = jnp.pad(v_t, ((0, K_pad - K), (0, N_pad - N_out)))
    s2 = scale.reshape(1, N_out)
    b2 = b_f32.reshape(1, N_out)
    if N_pad != N_out:
        s2 = jnp.pad(s2, ((0, 0), (0, N_pad - N_out)))
        b2 = jnp.pad(b2, ((0, 0), (0, N_pad - N_out)))

    # --- adaptive loop order: bigger operand on the outer axis --------------
    # (when k_tiles == 1 the outer-axis operand is fetched from HBM only once;
    #  the inner-axis operand is re-streamed outer_tiles times)
    m_outer = (M * K) >= (N_out * K)

    if k_tiles == 1:
        if m_outer:
            grid = (m_tiles, n_tiles)
            x_map = lambda i, j: (i, 0)
            v_map = lambda i, j: (0, j)
            sb_map = lambda i, j: (0, j)
            o_map = lambda i, j: (i, j)
        else:
            grid = (n_tiles, m_tiles)
            x_map = lambda i, j: (j, 0)
            v_map = lambda i, j: (0, i)
            sb_map = lambda i, j: (0, i)
            o_map = lambda i, j: (j, i)
        kernel = _kernel_single_k
        scratch = []
        semantics = ("parallel", "parallel")
    else:
        if m_outer:
            grid = (m_tiles, n_tiles, k_tiles)
            x_map = lambda i, j, k: (i, k)
            v_map = lambda i, j, k: (k, j)
            sb_map = lambda i, j, k: (0, j)
            o_map = lambda i, j, k: (i, j)
        else:
            grid = (n_tiles, m_tiles, k_tiles)
            x_map = lambda i, j, k: (j, k)
            v_map = lambda i, j, k: (k, i)
            sb_map = lambda i, j, k: (0, i)
            o_map = lambda i, j, k: (j, i)
        kernel = _kernel_multi_k
        scratch = [pltpu.VMEM((TM, TN), jnp.float32)]
        semantics = ("parallel", "parallel", "arbitrary")

    # --- VMEM budget from the actual tile footprint (double-buffered) -------
    out_sz = jnp.dtype(out_dtype).itemsize
    tile_bytes = (2 * TM * TK * mm_sz          # x blocks
                  + 2 * TK * TN * mm_sz        # v blocks
                  + 2 * TM * TN * out_sz       # output blocks
                  + TM * TN * 4                # f32 accumulator (K-tiled case)
                  + 4 * TN * 4 * 2)            # scale + bias blocks
    vmem_limit = int(min(max(tile_bytes * 3 // 2 + (4 << 20), 32 << 20),
                         64 << 20))

    out = pl.pallas_call(
        kernel,
        out_shape=jax.ShapeDtypeStruct((M_pad, N_pad), out_dtype),
        grid=grid,
        in_specs=[
            pl.BlockSpec((TM, TK), x_map),     # activations
            pl.BlockSpec((TK, TN), v_map),     # raw (transposed) weight
            pl.BlockSpec((1, TN), sb_map),     # per-out-feature scale (f32)
            pl.BlockSpec((1, TN), sb_map),     # bias (f32)
        ],
        out_specs=pl.BlockSpec((TM, TN), o_map),
        scratch_shapes=scratch,
        compiler_params=pltpu.CompilerParams(
            dimension_semantics=semantics,
            vmem_limit_bytes=vmem_limit),
    )(x2, v_t, s2, b2)

    out = out[:M, :N_out]
    return out.reshape(*lead, N_out) if lead else out.reshape(N_out)


def _reference(x, v, g, b):
    norm = jnp.sqrt(jnp.sum(v * v, axis=1, keepdims=True))
    w = g.reshape(-1, 1) * v / norm
    return jnp.einsum("...k,nk->...n", x, w) + b


if __name__ == "__main__":
    key = jax.random.PRNGKey(0)

    # Case 1: small shapes consistent with LinearWeightNorm(32, 64) applied to
    # x of shape (batch=2, seq=8, in_features=32); f32 operands, tight check.
    B, S, IN, OUT = 2, 8, 32, 64
    kx, kv = jax.random.split(key)
    x = jax.random.normal(kx, (B, S, IN), dtype=jnp.float32)
    # reset_parameters(): weight ~ N(0, 0.05), bias = 0; weight_norm init sets
    # v = weight and g = per-row ||weight||.
    v = 0.05 * jax.random.normal(kv, (OUT, IN), dtype=jnp.float32)
    g = jnp.sqrt(jnp.sum(v * v, axis=1))
    b = jnp.zeros((OUT,), dtype=jnp.float32)

    out = jax.block_until_ready(
        linear_weightnorm(x, v, g, b, matmul_dtype=jnp.float32))
    ref = _reference(x, v, g, b)
    assert out.shape == (B, S, OUT), out.shape
    assert jnp.allclose(out, ref, atol=1e-5, rtol=1e-5), float(
        jnp.max(jnp.abs(out - ref)))

    # Case 2: multi-tile grid with default bf16 MXU operands / f32 accumulation
    # (exercises padding, adaptive loop order with N > M, megacore-parallel).
    B2, S2, IN2, OUT2 = 4, 64, 256, 384
    kx2, kv2 = jax.random.split(kv)
    xb = jax.random.normal(kx2, (B2, S2, IN2), dtype=jnp.float32)
    vb = 0.05 * jax.random.normal(kv2, (OUT2, IN2), dtype=jnp.float32)
    gb = jnp.sqrt(jnp.sum(vb * vb, axis=1))
    bb = 0.1 * jnp.arange(OUT2, dtype=jnp.float32)

    ref2 = _reference(xb, vb, gb, bb)
    out2 = jax.block_until_ready(
        linear_weightnorm(xb, vb, gb, bb, block_m=128, block_n=128))
    assert out2.shape == (B2, S2, OUT2), out2.shape
    assert jnp.allclose(out2, ref2, atol=5e-2, rtol=5e-2), float(
        jnp.max(jnp.abs(out2 - ref2)))

    # Case 3: K-tiled path (block_k forces 2 K tiles) with f32 operands,
    # tight tolerance to validate the accumulator-scratch structure.
    out3 = jax.block_until_ready(
        linear_weightnorm(xb, vb, gb, bb, block_m=128, block_n=128,
                          block_k=128, matmul_dtype=jnp.float32))
    assert jnp.allclose(out3, ref2, atol=1e-4, rtol=1e-4), float(
        jnp.max(jnp.abs(out3 - ref2)))

    # Case 4: bf16 output writeback (half the output HBM traffic).
    out4 = jax.block_until_ready(
        linear_weightnorm(xb, vb, gb, bb, block_m=128, block_n=128,
                          matmul_dtype=jnp.float32, out_dtype=jnp.bfloat16))
    assert out4.dtype == jnp.bfloat16
    assert jnp.allclose(out4.astype(jnp.float32), ref2, atol=2e-2, rtol=2e-2), \
        float(jnp.max(jnp.abs(out4.astype(jnp.float32) - ref2)))

    print("KERNEL_OK")
</pallas_src>

<mosaic_0001>
module attributes {stable_mosaic.version = 11 : i64} {
  func.func @_kernel_single_k(%arg0: i32, %arg1: i32, %arg2: memref<16x32xf32, #tpu.memory_space<vmem>>, %arg3: memref<32x128xf32, #tpu.memory_space<vmem>>, %arg4: memref<1x128xf32, #tpu.memory_space<vmem>>, %arg5: memref<1x128xf32, #tpu.memory_space<vmem>>, %arg6: memref<16x128xf32, #tpu.memory_space<vmem>>) attributes {dimension_semantics = [#tpu.dimension_semantics<parallel>, #tpu.dimension_semantics<parallel>], iteration_bounds = array<i64: 1, 1>, scalar_prefetch = 0 : i64, scratch_operands = 0 : i64, tpu.core_type = #tpu.core_type<tc>, window_params = [{transform_indices = @transform_0, window_bounds = array<i64: 16, 32>}, {transform_indices = @transform_1, window_bounds = array<i64: 32, 128>}, {transform_indices = @transform_2, window_bounds = array<i64: 1, 128>}, {transform_indices = @transform_3, window_bounds = array<i64: 1, 128>}, {transform_indices = @transform_4, window_bounds = array<i64: 16, 128>}]} {
    %c0 = arith.constant 0 : index
    %c0_0 = arith.constant 0 : index
    %0 = vector.load %arg2[%c0, %c0_0] : memref<16x32xf32, #tpu.memory_space<vmem>>, vector<16x32xf32>
    %c0_1 = arith.constant 0 : index
    %c0_2 = arith.constant 0 : index
    %1 = vector.load %arg3[%c0_1, %c0_2] : memref<32x128xf32, #tpu.memory_space<vmem>>, vector<32x128xf32>
    %cst = arith.constant dense<0.000000e+00> : vector<16x128xf32>
    %2 = tpu.matmul %0, %1, %cst {dimension_numbers = #tpu.dot_dimension_numbers<[1], [0], [0], [1], [0, 0, 1, 1], [], []>} : vector<16x32xf32>, vector<32x128xf32>, vector<16x128xf32> -> vector<16x128xf32>
    %c0_3 = arith.constant 0 : index
    %c0_4 = arith.constant 0 : index
    %3 = vector.load %arg4[%c0_3, %c0_4] : memref<1x128xf32, #tpu.memory_space<vmem>>, vector<1x128xf32>
    %4 = vector.broadcast %3 : vector<1x128xf32> to vector<16x128xf32>
    %5 = arith.mulf %2, %4 : vector<16x128xf32>
    %c0_5 = arith.constant 0 : index
    %c0_6 = arith.constant 0 : index
    %6 = vector.load %arg5[%c0_5, %c0_6] : memref<1x128xf32, #tpu.memory_space<vmem>>, vector<1x128xf32>
    %7 = vector.broadcast %6 : vector<1x128xf32> to vector<16x128xf32>
    %8 = arith.addf %5, %7 : vector<16x128xf32>
    %c0_7 = arith.constant 0 : index
    %c0_8 = arith.constant 0 : index
    %9 = vector.load %arg6[%c0_7, %c0_8] : memref<16x128xf32, #tpu.memory_space<vmem>>, vector<16x128xf32>
    tpu.vector_store %arg6[%c0_7, %c0_8], %8 {strides = array<i32>} : memref<16x128xf32, #tpu.memory_space<vmem>>, vector<16x128xf32>,
    return
  }
  func.func @transform_0(%arg0: i32, %arg1: i32) -> (i32, i32) {
    %c0_i32 = arith.constant 0 : i32
    %c0_i32_0 = arith.constant 0 : i32
    return %arg1, %c0_i32 : i32, i32
  }
  func.func @transform_1(%arg0: i32, %arg1: i32) -> (i32, i32) {
    %c0_i32 = arith.constant 0 : i32
    %c0_i32_0 = arith.constant 0 : i32
    return %c0_i32, %arg0 : i32, i32
  }
  func.func @transform_2(%arg0: i32, %arg1: i32) -> (i32, i32) {
    %c0_i32 = arith.constant 0 : i32
    %c0_i32_0 = arith.constant 0 : i32
    return %c0_i32, %arg0 : i32, i32
  }
  func.func @transform_3(%arg0: i32, %arg1: i32) -> (i32, i32) {
    %c0_i32 = arith.constant 0 : i32
    %c0_i32_0 = arith.constant 0 : i32
    return %c0_i32, %arg0 : i32, i32
  }
  func.func @transform_4(%arg0: i32, %arg1: i32) -> (i32, i32) {
    %c0_i32 = arith.constant 0 : i32
    return %arg1, %arg0 : i32, i32
  }
}

</mosaic_0001>

<llo_original>
// kernel: tpu_custom_call.1
$region0: #{tpu_custom_call.1}
  #allocation0 [shape = 'u32[]', space=smem, size = 0x4, offset = 0x4, fixed_abs, tag = 'smem constant byte address 0x4 - core index']
  #allocation1 [shape = 'u32[144,128]{1,0:T(1,128)}', space=vmem, size = 0x12000, scoped, tag = 'internal scratch']
  %s0 = inlined_call_operand.hbm [shape: f32[16,32], index: 0, kind: input, shape index: {}]
  %s1 = inlined_call_operand.hbm [shape: f32[32,128], index: 1, kind: input, shape index: {}]
  %s2 = inlined_call_operand.vmem [shape: f32[1,128], index: 2, kind: input, shape index: {}]
  %s3 = inlined_call_operand.vmem [shape: f32[1,128], index: 3, kind: input, shape index: {}]
  %s4 = inlined_call_operand.hbm [shape: f32[16,128], index: 4, kind: output, shape index: {}]
  %s5 = sld [smem:[#allocation0]]
  $region34: #{tpu_custom_call.1} parent=0
    _
  %s7 = ssub.s32 1, %s5
  %s8 = scalar_select 0, %s7, %s5
  $region1: #{tpu_custom_call.1} parent=0
    #allocation2 [shape = 'u8[8192]{0}', space=vmem, size = 0x2000, scoped, tag = 'input window, operand 0, single buffered']
    #allocation3 [shape = 's32[1]{0}', space=sflag, size = 0x4, scoped, tag = 'scoped memory for tpu_custom_call.1']
    #allocation4 [shape = 's32[1]{0}', space=sflag, size = 0x4, scoped, tag = 'scoped memory for tpu_custom_call.1']
    #allocation5 [shape = 'u8[16384]{0}', space=vmem, size = 0x4000, scoped, tag = 'input window, operand 1, single buffered']
    #allocation6 [shape = 's32[1]{0}', space=sflag, size = 0x4, scoped, tag = 'scoped memory for tpu_custom_call.1']
    #allocation7 [shape = 'u8[8192]{0}', space=vmem, size = 0x2000, scoped, tag = 'output window, operand 0, single buffered']
    %9 = vsyncpa [#allocation3], 0
    %10 = vsyncpa [#allocation6], 0
    %11 = vsyncpa [#allocation4], 0
    // Predicated region
    $region2: #{tpu_custom_call.1} parent=1 // pred_check
      _
    $region3: #{tpu_custom_call.1} parent=1 // pred_check_branch
      %13 = sbr.rel (0) target = $region5
    $region4: #{tpu_custom_call.1} parent=1 // pred_region
      %s15 = ssub.s32 256, 256
      %16 = vsyncadd [#allocation3], %s15
      %s17 = sshll.u32 [#allocation2], 4
      %s18 = int_to_ptr.vmem [resolvable:$true] %s17
      %23 = dma.hbm_to_vmem [thread:$0]  %s0, 256, %s18, [#allocation3], 128, 128, 8
    $region5: #{tpu_custom_call.1} parent=1 // pred_fallthru
      _
    // Predicated region
    $region6: #{tpu_custom_call.1} parent=1 // pred_check
      _
    $region7: #{tpu_custom_call.1} parent=1 // pred_check_branch
      %25 = sbr.rel (0) target = $region9
    $region8: #{tpu_custom_call.1} parent=1 // pred_region
      %s27 = ssub.s32 512, 512
      %28 = vsyncadd [#allocation6], %s27
      %s29 = sshll.u32 [#allocation5], 4
      %s30 = int_to_ptr.vmem [resolvable:$true] %s29
      %35 = dma.hbm_to_vmem [thread:$0]  %s1, 512, %s30, [#allocation6], 128, 128, 8
    $region9: #{tpu_custom_call.1} parent=1 // pred_fallthru
      _
    // Predicated region
    $region10: #{tpu_custom_call.1} parent=1 // pred_check
      _
    $region11: #{tpu_custom_call.1} parent=1 // pred_check_branch
      %37 = sbr.rel (0) target = $region13
    $region12: #{tpu_custom_call.1} parent=1 // pred_region
      _
    $region13: #{tpu_custom_call.1} parent=1 // pred_fallthru
      _
    // Predicated region
    $region14: #{tpu_custom_call.1} parent=1 // pred_check
      _
    $region15: #{tpu_custom_call.1} parent=1 // pred_check_branch
      %39 = sbr.rel (0) target = $region17
    $region16: #{tpu_custom_call.1} parent=1 // pred_region
      _
    $region17: #{tpu_custom_call.1} parent=1 // pred_fallthru
      _
    // Predicated region
    $region18: #{tpu_custom_call.1} parent=1 // pred_check
      _
    $region19: #{tpu_custom_call.1} parent=1 // pred_check_branch
      %41 = sbr.rel (0) target = $region21
    $region20: #{tpu_custom_call.1} parent=1 // pred_region
      %42 = dma.done [#allocation3], 256
    $region21: #{tpu_custom_call.1} parent=1 // pred_fallthru
      _
    // Predicated region
    $region22: #{tpu_custom_call.1} parent=1 // pred_check
      _
    $region23: #{tpu_custom_call.1} parent=1 // pred_check_branch
      %44 = sbr.rel (0) target = $region25
    $region24: #{tpu_custom_call.1} parent=1 // pred_region
      %45 = dma.done [#allocation6], 512
    $region25: #{tpu_custom_call.1} parent=1 // pred_fallthru
      _
    %v46 = vld [vmem:[#allocation2] sm:$0xff]
    %v47 = vld [vmem:[#allocation2 + $0x8] sm:$0xff]
    %v48 = vld [vmem:[#allocation5] sm:$0xff]
    %v49 = vld [vmem:[#allocation5 + $0x8] sm:$0xff]
    %v50 = vld [vmem:[#allocation5 + $0x10] sm:$0xff]
    %v51 = vld [vmem:[#allocation5 + $0x18] sm:$0xff]
    %vm52 = vcmask 261120
    %v54 = vsel %vm52, %v46, 0
    %v57 = vsel %vm52, %v47, 0
    %59 = vmatprep.subr.mxu0 0.0
    %60 = vmatpush1.msra.mxu0 %v48
    %61 = vmatprep.subr.mxu0 0.0
    %62 = vmatpush1.msra.mxu0 %v49
    %63 = vmatprep.subr.mxu0 0.0
    %64 = vmatpush1.msra.mxu0 %v50
    %65 = vmatprep.subr.mxu0 0.0
    %66 = vmatpush1.msra.mxu0 %v51
    %67 = vmatprep.subr.mxu0 0.0
    %68 = vmatpush1.msra.mxu0 0.0
    %69 = vmatprep.subr.mxu0 0.0
    %70 = vmatpush1.msra.mxu0 0.0
    %71 = vmatprep.subr.mxu0 0.0
    %72 = vmatpush1.msra.mxu0 0.0
    %73 = vmatprep.subr.mxu0 0.0
    %74 = vmatpush1.msra.mxu0 0.0
    %75 = vmatprep.subr.mxu0 0.0
    %76 = vmatpush1.msra.mxu0 0.0
    %77 = vmatprep.subr.mxu0 0.0
    %78 = vmatpush1.msra.mxu0 0.0
    %79 = vmatprep.subr.mxu0 0.0
    %80 = vmatpush1.msra.mxu0 0.0
    %81 = vmatprep.subr.mxu0 0.0
    %82 = vmatpush1.msra.mxu0 0.0
    %83 = vmatprep.subr.mxu0 0.0
    %84 = vmatpush1.msra.mxu0 0.0
    %85 = vmatprep.subr.mxu0 0.0
    %86 = vmatpush1.msra.mxu0 0.0
    %87 = vmatprep.subr.mxu0 0.0
    %88 = vmatpush1.msra.mxu0 0.0
    %89 = vmatprep.subr.mxu0 0.0
    %90 = vmatpush1.msra.mxu0 0.0
    %91 = vmatprep.subr.mxu0 0.0
    %92 = vmatpush1.msra.mxu0 0.0
    %93 = vmatprep.subr.mxu0 0.0
    %94 = vmatpush1.msra.mxu0 0.0
    %95 = vmatprep.subr.mxu0 0.0
    %96 = vmatpush1.msra.mxu0 0.0
    %97 = vmatprep.subr.mxu0 0.0
    %98 = vmatpush1.msra.mxu0 0.0
    %99 = vmatprep.subr.mxu0 0.0
    %100 = vmatpush1.msra.mxu0 0.0
    %101 = vmatprep.subr.mxu0 0.0
    %102 = vmatpush1.msra.mxu0 0.0
    %103 = vmatprep.subr.mxu0 0.0
    %104 = vmatpush1.msra.mxu0 0.0
    %105 = vmatprep.subr.mxu0 0.0
    %106 = vmatpush1.msra.mxu0 0.0
    %107 = vmatprep.subr.mxu0 0.0
    %108 = vmatpush1.msra.mxu0 0.0
    %109 = vmatprep.subr.mxu0 0.0
    %110 = vmatpush1.msra.mxu0 0.0
    %111 = vmatprep.subr.mxu0 0.0
    %112 = vmatpush1.msra.mxu0 0.0
    %113 = vmatprep.subr.mxu0 0.0
    %114 = vmatpush1.msra.mxu0 0.0
    %115 = vmatprep.subr.mxu0 0.0
    %116 = vmatpush1.msra.mxu0 0.0
    %117 = vmatprep.subr.mxu0 0.0
    %118 = vmatpush1.msra.mxu0 0.0
    %119 = vmatprep.subr.mxu0 0.0
    %120 = vmatpush1.msra.mxu0 0.0
    %121 = vmatprep.subr.mxu0 0.0
    %122 = vmatpush1.msra.mxu0 0.0
    %123 = vmatprep.mubr.f32.mxu0 0.0
    %124 = vmatmul.mubr.f32.gmra.mrb[0].mxu0 %v54
    %v125 = vpop.f32.mrb[0].mxu0
    %v126 = vadd.f32 0.0, %v125
    %v127 = vpop.f32.mrb[0].mxu0
    %128 = vmatprep.mubr.f32.mxu0 0.0
    %129 = vmatmul.mubr.f32.gmra.mrb[0].mxu0 %v57
    %v130 = vpop.f32.mrb[0].mxu0
    %v131 = vadd.f32 0.0, %v130
    %v132 = vpop.f32.mrb[0].mxu0
    %133 = vdwg.mxu0
    %v134 = vld [vmem:[%s2] sm:$0x1]
    %v136 = vlaneseq
    %v137 = vshrl.u32 %v136, 7
    %v138 = vsub.s32 0, %v137
    %v139 = vrot.slane %v134, %v138
    %v141 = vmul.f32 %v126, %v139
    %v142 = vmul.f32 %v131, %v139
    %v143 = vld [vmem:[%s3] sm:$0x1]
    %v145 = vlaneseq
    %v146 = vshrl.u32 %v145, 7
    %v147 = vsub.s32 0, %v146
    %v148 = vrot.slane %v143, %v147
    %v150 = vadd.f32 %v141, %v148
    %v151 = vadd.f32 %v142, %v148
    %152 = vst [vmem:[#allocation7] sm:$0xff] %v150
    %153 = vst [vmem:[#allocation7 + $0x8] sm:$0xff] %v151
    // Predicated region
    $region26: #{tpu_custom_call.1} parent=1 // pred_check
      _
    $region27: #{tpu_custom_call.1} parent=1 // pred_check_branch
      %155 = sbr.rel (0) target = $region29
    $region28: #{tpu_custom_call.1} parent=1 // pred_region
      %s157 = ssub.s32 256, 256
      %158 = vsyncadd [#allocation4], %s157
      %s159 = sshll.u32 [#allocation7], 4
      %s160 = int_to_ptr.vmem [resolvable:$true] %s159
      %165 = dma.vmem_to_hbm [thread:$0]  %s160, 256, %s4, [#allocation4], 128, 128, 8
    $region29: #{tpu_custom_call.1} parent=1 // pred_fallthru
      _
    // Predicated region
    $region30: #{tpu_custom_call.1} parent=1 // pred_check
      _
    $region31: #{tpu_custom_call.1} parent=1 // pred_check_branch
      %167 = sbr.rel (0) target = $region33
    $region32: #{tpu_custom_call.1} parent=1 // pred_region
      %168 = dma.done [#allocation4], 256
    $region33: #{tpu_custom_call.1} parent=1 // pred_fallthru
      _
    %169 = vsyncpa [#allocation3], 1
    %170 = vsyncpa [#allocation6], 1
    %171 = vsyncpa [#allocation4], 1

</llo_original>
